<compile_context>
chip_gen: v7x
topology: tpu7x:2x2x1
jax: 0.10.0
libtpu: 0.0.40
codegen_flags: <defaults>
</compile_context>

<pallas_src>
import functools

import jax
import jax.numpy as jnp
from jax.experimental import pallas as pl
from jax.experimental.pallas import tpu as pltpu

_EPS = 1e-12          # matches torch.nn.functional.normalize default eps
_LANE = 128
_SUBLANE = 8


def _round_up(x, m):
    return ((x + m - 1) // m) * m


# ---------------------------------------------------------------------------
# Kernels
# ---------------------------------------------------------------------------

def _flat_kernel(w_ref, a_ref, *, k):
    """Lane-dense path (K < 128).

    Block is a (tm, K*K) slab of flattened confusion matrices; element
    (m, i*K + j) is W[m, i, j].  The dim=1 (row) reduction is accumulated from
    the K contiguous width-K lane slabs, so no in-kernel reshape/relayout is
    needed, intermediates stay (tm, K)-sized, and all HBM/VMEM DMA traffic is
    lane-dense.
    """
    # Pass 1: per-(matrix, column) L1 norm of relu(W).  relu >= 0 so the sum
    # is the L1 norm exactly.
    sums = jnp.maximum(w_ref[:, 0:k], 0.0)
    for i in range(1, k):
        sums = sums + jnp.maximum(w_ref[:, i * k:(i + 1) * k], 0.0)
    inv = 1.0 / jnp.maximum(sums, _EPS)          # exact divide on the small array

    # Pass 2: normalize slab-by-slab; the HBM writeback of the whole block is
    # still one dense DMA.
    for i in range(k):
        sl = slice(i * k, (i + 1) * k)
        a_ref[:, sl] = jnp.maximum(w_ref[:, sl], 0.0) * inv


def _block_kernel_3d(w_ref, a_ref):
    """Generic path (K >= 128): block is (tm, K, tc); the normalization axis
    (dim 1) stays whole inside every block, so no cross-block accumulator."""
    a = jnp.maximum(w_ref[...], 0.0)                       # ReLU (VPU)
    norm = jnp.sum(a, axis=1, keepdims=True)               # L1 over dim=1 (XLU)
    inv = 1.0 / jnp.maximum(norm, _EPS)                    # divide only (tm,1,tc)
    a_ref[...] = a * inv


# ---------------------------------------------------------------------------
# Wrapper
# ---------------------------------------------------------------------------

def _pick_tile_m(m, per_m_bytes, per_buffer_budget, sublane_aligned, tile_m):
    """Rows (matrices) per block: as many as fit the per-buffer VMEM budget,
    preferring >= 2 M-tiles so both v7x TensorCores get work."""
    cap = max(1, per_buffer_budget // max(per_m_bytes, 1))
    if tile_m is not None:
        cap = max(1, min(cap, int(tile_m)))
    if cap >= m:
        half = -(-m // 2)  # cdiv(m, 2)
        if m > 1 and half * per_m_bytes >= (512 << 10):
            tm = half                      # two tiles, each still >= ~512 KiB
        else:
            return m                       # too small to be worth splitting
    else:
        tm = cap
    if tm >= m:
        return m
    if sublane_aligned and tm % _SUBLANE != 0:
        tm = max(_SUBLANE, (tm // _SUBLANE) * _SUBLANE)
        if tm >= m:
            return m
    return tm


def confusion_matrices_forward(W, *, tile_m=None,
                               vmem_block_budget_bytes=16 * 1024 * 1024):
    """Pallas equivalent of confusion_matrices_tracereg.forward().

    W: [M, K, K] float parameter. Returns A = F.normalize(relu(W), p=1, dim=1)
    as float32 [M, K, K].  tile_m=None -> block size along M derived from the
    VMEM budget (vmem_block_budget_bytes covers the 4 double-buffered in/out
    pipeline buffers).
    """
    M, K, K2 = W.shape
    assert K == K2, "confusion matrices must be square"
    W = W.astype(jnp.float32)

    per_buffer_budget = max(1, vmem_block_budget_bytes // 4)
    cost = pl.CostEstimate(flops=3 * M * K * K, transcendentals=0,
                           bytes_accessed=2 * M * K * K * 4)

    def cparams(sem):
        return pltpu.CompilerParams(dimension_semantics=sem,
                                    vmem_limit_bytes=40 * 1024 * 1024)

    if K < _LANE:
        # ---- lane-dense path: flatten to (M, K*K); free for contiguous W ----
        kk = K * K
        per_m_bytes = _round_up(kk, _LANE) * 4            # padded bytes / matrix
        tm = _pick_tile_m(M, per_m_bytes, per_buffer_budget, True, tile_m)
        grid = (pl.cdiv(M, tm),)
        out = pl.pallas_call(
            functools.partial(_flat_kernel, k=K),
            out_shape=jax.ShapeDtypeStruct((M, kk), jnp.float32),
            grid_spec=pltpu.PrefetchScalarGridSpec(
                num_scalar_prefetch=0,
                grid=grid,
                in_specs=[pl.BlockSpec((tm, kk), lambda m: (m, 0))],
                out_specs=pl.BlockSpec((tm, kk), lambda m: (m, 0)),
            ),
            compiler_params=cparams(("parallel",)),
            cost_estimate=cost,
        )(W.reshape(M, kk))
        return out.reshape(M, K, K)

    # ---- generic path (K >= 128): keep 3-D; tile lanes when K % 128 == 0 ----
    if K % _LANE == 0:
        tc = 512 if K % 512 == 0 else (256 if K % 256 == 0 else 128)
    else:
        tc = K  # block equals the full last dim -> layout constraint satisfied
    per_m_bytes = _round_up(K, _SUBLANE) * _round_up(tc, _LANE) * 4
    tm = _pick_tile_m(M, per_m_bytes, per_buffer_budget, False, tile_m)
    grid = (pl.cdiv(M, tm), K // tc)
    return pl.pallas_call(
        _block_kernel_3d,
        out_shape=jax.ShapeDtypeStruct((M, K, K), jnp.float32),
        grid_spec=pltpu.PrefetchScalarGridSpec(
            num_scalar_prefetch=0,
            grid=grid,
            in_specs=[pl.BlockSpec((tm, K, tc), lambda m, c: (m, 0, c))],
            out_specs=pl.BlockSpec((tm, K, tc), lambda m, c: (m, 0, c)),
        ),
        compiler_params=cparams(("parallel", "parallel")),
        cost_estimate=cost,
    )(W)


def close_to_identity_init(M, K):
    """'close_to_identity' init from __init__: W[i] = eye(K) for every i."""
    return jnp.broadcast_to(jnp.eye(K, dtype=jnp.float32), (M, K, K))


# TODO(synk): the 'from_file' init path (np.loadtxt('A_matrix_init.txt')) needs
# file I/O and is not reproduced here; 'mle_based' is just log(A_init + 0.01).


def _reference_forward(W):
    """Pure-JAX reference with exact F.normalize(p=1, dim=1) semantics."""
    A = jnp.maximum(W.astype(jnp.float32), 0.0)
    norm = jnp.sum(jnp.abs(A), axis=1, keepdims=True)
    return A / jnp.maximum(norm, _EPS)


if __name__ == "__main__":
    key = jax.random.PRNGKey(0)
    k1, k2, k3 = jax.random.split(key, 3)

    # (a) typical small case: M annotators, K classes -> lane-dense path,
    #     budget-driven single block.
    M, K = 5, 8
    W_a = jax.random.normal(k1, (M, K, K), dtype=jnp.float32)
    A_a = jax.block_until_ready(confusion_matrices_forward(W_a))
    assert A_a.shape == (M, K, K)
    assert jnp.allclose(A_a, _reference_forward(W_a), atol=1e-5, rtol=1e-5)
    col_sums = jnp.sum(A_a, axis=1)
    nonzero = jnp.sum(jnp.maximum(W_a, 0.0), axis=1) > 0
    assert jnp.allclose(jnp.where(nonzero, col_sums, 1.0), 1.0, atol=1e-5)

    # (b) lane-dense path with multiple M-tiles and a ragged last tile.
    W_b = jax.random.normal(k2, (37, 16, 16), dtype=jnp.float32)
    A_b = jax.block_until_ready(confusion_matrices_forward(W_b, tile_m=16))
    assert jnp.allclose(A_b, _reference_forward(W_b), atol=1e-5, rtol=1e-5)
    A_b_auto = jax.block_until_ready(confusion_matrices_forward(W_b))
    assert jnp.allclose(A_b_auto, _reference_forward(W_b), atol=1e-5, rtol=1e-5)

    # (c) generic 3-D path (K >= 128) with a ragged last M-tile.
    W_c = jax.random.normal(k3, (5, 128, 128), dtype=jnp.float32)
    A_c = jax.block_until_ready(confusion_matrices_forward(W_c, tile_m=2))
    assert jnp.allclose(A_c, _reference_forward(W_c), atol=1e-5, rtol=1e-5)

    # (d) 'close_to_identity' init: identity matrices are a fixed point.
    W_id = close_to_identity_init(5, 8)
    A_id = jax.block_until_ready(confusion_matrices_forward(W_id))
    assert jnp.allclose(A_id, W_id, atol=1e-6)

    print("KERNEL_OK")
</pallas_src>

<mosaic_0001>
module attributes {stable_mosaic.version = 11 : i64} {
  func.func @_flat_kernel(%arg0: i32, %arg1: memref<5x64xf32, #tpu.memory_space<vmem>>, %arg2: memref<5x64xf32, #tpu.memory_space<vmem>>) attributes {dimension_semantics = [#tpu.dimension_semantics<parallel>], iteration_bounds = array<i64: 1>, scalar_prefetch = 0 : i64, scratch_operands = 0 : i64, tpu.core_type = #tpu.core_type<tc>, window_params = [{transform_indices = @transform_0, window_bounds = array<i64: 5, 64>}, {transform_indices = @transform_1, window_bounds = array<i64: 5, 64>}]} {
    %c0 = arith.constant 0 : index
    %c0_0 = arith.constant 0 : index
    %0 = vector.load %arg1[%c0, %c0_0] : memref<5x64xf32, #tpu.memory_space<vmem>>, vector<5x8xf32>
    %cst = arith.constant 0.000000e+00 : f32
    %1 = vector.broadcast %cst : f32 to vector<5x8xf32>
    %2 = arith.maximumf %0, %1 : vector<5x8xf32>
    %c0_1 = arith.constant 0 : index
    %c8 = arith.constant 8 : index
    %3 = vector.load %arg1[%c0_1, %c8] : memref<5x64xf32, #tpu.memory_space<vmem>>, vector<5x8xf32>
    %cst_2 = arith.constant 0.000000e+00 : f32
    %4 = vector.broadcast %cst_2 : f32 to vector<5x8xf32>
    %5 = arith.maximumf %3, %4 : vector<5x8xf32>
    %6 = arith.addf %2, %5 : vector<5x8xf32>
    %c0_3 = arith.constant 0 : index
    %c16 = arith.constant 16 : index
    %7 = vector.load %arg1[%c0_3, %c16] : memref<5x64xf32, #tpu.memory_space<vmem>>, vector<5x8xf32>
    %cst_4 = arith.constant 0.000000e+00 : f32
    %8 = vector.broadcast %cst_4 : f32 to vector<5x8xf32>
    %9 = arith.maximumf %7, %8 : vector<5x8xf32>
    %10 = arith.addf %6, %9 : vector<5x8xf32>
    %c0_5 = arith.constant 0 : index
    %c24 = arith.constant 24 : index
    %11 = vector.load %arg1[%c0_5, %c24] : memref<5x64xf32, #tpu.memory_space<vmem>>, vector<5x8xf32>
    %cst_6 = arith.constant 0.000000e+00 : f32
    %12 = vector.broadcast %cst_6 : f32 to vector<5x8xf32>
    %13 = arith.maximumf %11, %12 : vector<5x8xf32>
    %14 = arith.addf %10, %13 : vector<5x8xf32>
    %c0_7 = arith.constant 0 : index
    %c32 = arith.constant 32 : index
    %15 = vector.load %arg1[%c0_7, %c32] : memref<5x64xf32, #tpu.memory_space<vmem>>, vector<5x8xf32>
    %cst_8 = arith.constant 0.000000e+00 : f32
    %16 = vector.broadcast %cst_8 : f32 to vector<5x8xf32>
    %17 = arith.maximumf %15, %16 : vector<5x8xf32>
    %18 = arith.addf %14, %17 : vector<5x8xf32>
    %c0_9 = arith.constant 0 : index
    %c40 = arith.constant 40 : index
    %19 = vector.load %arg1[%c0_9, %c40] : memref<5x64xf32, #tpu.memory_space<vmem>>, vector<5x8xf32>
    %cst_10 = arith.constant 0.000000e+00 : f32
    %20 = vector.broadcast %cst_10 : f32 to vector<5x8xf32>
    %21 = arith.maximumf %19, %20 : vector<5x8xf32>
    %22 = arith.addf %18, %21 : vector<5x8xf32>
    %c0_11 = arith.constant 0 : index
    %c48 = arith.constant 48 : index
    %23 = vector.load %arg1[%c0_11, %c48] : memref<5x64xf32, #tpu.memory_space<vmem>>, vector<5x8xf32>
    %cst_12 = arith.constant 0.000000e+00 : f32
    %24 = vector.broadcast %cst_12 : f32 to vector<5x8xf32>
    %25 = arith.maximumf %23, %24 : vector<5x8xf32>
    %26 = arith.addf %22, %25 : vector<5x8xf32>
    %c0_13 = arith.constant 0 : index
    %c56 = arith.constant 56 : index
    %27 = vector.load %arg1[%c0_13, %c56] : memref<5x64xf32, #tpu.memory_space<vmem>>, vector<5x8xf32>
    %cst_14 = arith.constant 0.000000e+00 : f32
    %28 = vector.broadcast %cst_14 : f32 to vector<5x8xf32>
    %29 = arith.maximumf %27, %28 : vector<5x8xf32>
    %30 = arith.addf %26, %29 : vector<5x8xf32>
    %cst_15 = arith.constant 9.99999996E-13 : f32
    %31 = vector.broadcast %cst_15 : f32 to vector<5x8xf32>
    %32 = arith.maximumf %30, %31 : vector<5x8xf32>
    %cst_16 = arith.constant 1.000000e+00 : f32
    %33 = vector.broadcast %cst_16 : f32 to vector<5x8xf32>
    %34 = arith.divf %33, %32 : vector<5x8xf32>
    %c0_17 = arith.constant 0 : index
    %c0_18 = arith.constant 0 : index
    %35 = vector.load %arg1[%c0_17, %c0_18] : memref<5x64xf32, #tpu.memory_space<vmem>>, vector<5x8xf32>
    %cst_19 = arith.constant 0.000000e+00 : f32
    %36 = vector.broadcast %cst_19 : f32 to vector<5x8xf32>
    %37 = arith.maximumf %35, %36 : vector<5x8xf32>
    %38 = arith.mulf %37, %34 : vector<5x8xf32>
    %c0_20 = arith.constant 0 : index
    %c0_21 = arith.constant 0 : index
    %39 = vector.load %arg2[%c0_20, %c0_21] : memref<5x64xf32, #tpu.memory_space<vmem>>, vector<5x8xf32>
    tpu.vector_store %arg2[%c0_20, %c0_21], %38 {strides = array<i32>} : memref<5x64xf32, #tpu.memory_space<vmem>>, vector<5x8xf32>,
    %c0_22 = arith.constant 0 : index
    %c8_23 = arith.constant 8 : index
    %40 = vector.load %arg1[%c0_22, %c8_23] : memref<5x64xf32, #tpu.memory_space<vmem>>, vector<5x8xf32>
    %cst_24 = arith.constant 0.000000e+00 : f32
    %41 = vector.broadcast %cst_24 : f32 to vector<5x8xf32>
    %42 = arith.maximumf %40, %41 : vector<5x8xf32>
    %43 = arith.mulf %42, %34 : vector<5x8xf32>
    %c0_25 = arith.constant 0 : index
    %c8_26 = arith.constant 8 : index
    %44 = vector.load %arg2[%c0_25, %c8_26] : memref<5x64xf32, #tpu.memory_space<vmem>>, vector<5x8xf32>
    tpu.vector_store %arg2[%c0_25, %c8_26], %43 {strides = array<i32>} : memref<5x64xf32, #tpu.memory_space<vmem>>, vector<5x8xf32>,
    %c0_27 = arith.constant 0 : index
    %c16_28 = arith.constant 16 : index
    %45 = vector.load %arg1[%c0_27, %c16_28] : memref<5x64xf32, #tpu.memory_space<vmem>>, vector<5x8xf32>
    %cst_29 = arith.constant 0.000000e+00 : f32
    %46 = vector.broadcast %cst_29 : f32 to vector<5x8xf32>
    %47 = arith.maximumf %45, %46 : vector<5x8xf32>
    %48 = arith.mulf %47, %34 : vector<5x8xf32>
    %c0_30 = arith.constant 0 : index
    %c16_31 = arith.constant 16 : index
    %49 = vector.load %arg2[%c0_30, %c16_31] : memref<5x64xf32, #tpu.memory_space<vmem>>, vector<5x8xf32>
    tpu.vector_store %arg2[%c0_30, %c16_31], %48 {strides = array<i32>} : memref<5x64xf32, #tpu.memory_space<vmem>>, vector<5x8xf32>,
    %c0_32 = arith.constant 0 : index
    %c24_33 = arith.constant 24 : index
    %50 = vector.load %arg1[%c0_32, %c24_33] : memref<5x64xf32, #tpu.memory_space<vmem>>, vector<5x8xf32>
    %cst_34 = arith.constant 0.000000e+00 : f32
    %51 = vector.broadcast %cst_34 : f32 to vector<5x8xf32>
    %52 = arith.maximumf %50, %51 : vector<5x8xf32>
    %53 = arith.mulf %52, %34 : vector<5x8xf32>
    %c0_35 = arith.constant 0 : index
    %c24_36 = arith.constant 24 : index
    %54 = vector.load %arg2[%c0_35, %c24_36] : memref<5x64xf32, #tpu.memory_space<vmem>>, vector<5x8xf32>
    tpu.vector_store %arg2[%c0_35, %c24_36], %53 {strides = array<i32>} : memref<5x64xf32, #tpu.memory_space<vmem>>, vector<5x8xf32>,
    %c0_37 = arith.constant 0 : index
    %c32_38 = arith.constant 32 : index
    %55 = vector.load %arg1[%c0_37, %c32_38] : memref<5x64xf32, #tpu.memory_space<vmem>>, vector<5x8xf32>
    %cst_39 = arith.constant 0.000000e+00 : f32
    %56 = vector.broadcast %cst_39 : f32 to vector<5x8xf32>
    %57 = arith.maximumf %55, %56 : vector<5x8xf32>
    %58 = arith.mulf %57, %34 : vector<5x8xf32>
    %c0_40 = arith.constant 0 : index
    %c32_41 = arith.constant 32 : index
    %59 = vector.load %arg2[%c0_40, %c32_41] : memref<5x64xf32, #tpu.memory_space<vmem>>, vector<5x8xf32>
    tpu.vector_store %arg2[%c0_40, %c32_41], %58 {strides = array<i32>} : memref<5x64xf32, #tpu.memory_space<vmem>>, vector<5x8xf32>,
    %c0_42 = arith.constant 0 : index
    %c40_43 = arith.constant 40 : index
    %60 = vector.load %arg1[%c0_42, %c40_43] : memref<5x64xf32, #tpu.memory_space<vmem>>, vector<5x8xf32>
    %cst_44 = arith.constant 0.000000e+00 : f32
    %61 = vector.broadcast %cst_44 : f32 to vector<5x8xf32>
    %62 = arith.maximumf %60, %61 : vector<5x8xf32>
    %63 = arith.mulf %62, %34 : vector<5x8xf32>
    %c0_45 = arith.constant 0 : index
    %c40_46 = arith.constant 40 : index
    %64 = vector.load %arg2[%c0_45, %c40_46] : memref<5x64xf32, #tpu.memory_space<vmem>>, vector<5x8xf32>
    tpu.vector_store %arg2[%c0_45, %c40_46], %63 {strides = array<i32>} : memref<5x64xf32, #tpu.memory_space<vmem>>, vector<5x8xf32>,
    %c0_47 = arith.constant 0 : index
    %c48_48 = arith.constant 48 : index
    %65 = vector.load %arg1[%c0_47, %c48_48] : memref<5x64xf32, #tpu.memory_space<vmem>>, vector<5x8xf32>
    %cst_49 = arith.constant 0.000000e+00 : f32
    %66 = vector.broadcast %cst_49 : f32 to vector<5x8xf32>
    %67 = arith.maximumf %65, %66 : vector<5x8xf32>
    %68 = arith.mulf %67, %34 : vector<5x8xf32>
    %c0_50 = arith.constant 0 : index
    %c48_51 = arith.constant 48 : index
    %69 = vector.load %arg2[%c0_50, %c48_51] : memref<5x64xf32, #tpu.memory_space<vmem>>, vector<5x8xf32>
    tpu.vector_store %arg2[%c0_50, %c48_51], %68 {strides = array<i32>} : memref<5x64xf32, #tpu.memory_space<vmem>>, vector<5x8xf32>,
    %c0_52 = arith.constant 0 : index
    %c56_53 = arith.constant 56 : index
    %70 = vector.load %arg1[%c0_52, %c56_53] : memref<5x64xf32, #tpu.memory_space<vmem>>, vector<5x8xf32>
    %cst_54 = arith.constant 0.000000e+00 : f32
    %71 = vector.broadcast %cst_54 : f32 to vector<5x8xf32>
    %72 = arith.maximumf %70, %71 : vector<5x8xf32>
    %73 = arith.mulf %72, %34 : vector<5x8xf32>
    %c0_55 = arith.constant 0 : index
    %c56_56 = arith.constant 56 : index
    %74 = vector.load %arg2[%c0_55, %c56_56] : memref<5x64xf32, #tpu.memory_space<vmem>>, vector<5x8xf32>
    tpu.vector_store %arg2[%c0_55, %c56_56], %73 {strides = array<i32>} : memref<5x64xf32, #tpu.memory_space<vmem>>, vector<5x8xf32>,
    return
  }
  func.func @transform_0(%arg0: i32) -> (i32, i32) {
    %c0_i32 = arith.constant 0 : i32
    %c0_i32_0 = arith.constant 0 : i32
    return %arg0, %c0_i32 : i32, i32
  }
  func.func @transform_1(%arg0: i32) -> (i32, i32) {
    %c0_i32 = arith.constant 0 : i32
    %c0_i32_0 = arith.constant 0 : i32
    return %arg0, %c0_i32 : i32, i32
  }
}

</mosaic_0001>

<llo_original>
// kernel: tpu_custom_call.1
$region0: #{tpu_custom_call.1}
  #allocation0 [shape = 'u32[]', space=smem, size = 0x4, offset = 0x4, fixed_abs, tag = 'smem constant byte address 0x4 - core index']
  #allocation1 [shape = 'u32[144,128]{1,0:T(1,128)}', space=vmem, size = 0x12000, scoped, tag = 'internal scratch']
  %s0 = inlined_call_operand.hbm [shape: f32[5,64], index: 0, kind: input, shape index: {}]
  %s1 = inlined_call_operand.hbm [shape: f32[5,64], index: 1, kind: output, shape index: {}]
  %s2 = sld [smem:[#allocation0]]
  $region18: #{tpu_custom_call.1} parent=0
    _
  %s4 = ssub.s32 1, %s2
  %s5 = scalar_select 0, %s4, %s2
  $region1: #{tpu_custom_call.1} parent=0
    #allocation2 [shape = 'u8[4096]{0}', space=vmem, size = 0x1000, scoped, tag = 'input window, operand 0, single buffered']
    #allocation3 [shape = 's32[1]{0}', space=sflag, size = 0x4, scoped, tag = 'scoped memory for tpu_custom_call.1']
    #allocation4 [shape = 's32[1]{0}', space=sflag, size = 0x4, scoped, tag = 'scoped memory for tpu_custom_call.1']
    #allocation5 [shape = 'u8[4096]{0}', space=vmem, size = 0x1000, scoped, tag = 'output window, operand 0, single buffered']
    %6 = vsyncpa [#allocation3], 0
    %7 = vsyncpa [#allocation4], 0
    // Predicated region
    $region2: #{tpu_custom_call.1} parent=1 // pred_check
      _
    $region3: #{tpu_custom_call.1} parent=1 // pred_check_branch
      %9 = sbr.rel (0) target = $region5
    $region4: #{tpu_custom_call.1} parent=1 // pred_region
      %s11 = ssub.s32 128, 128
      %12 = vsyncadd [#allocation3], %s11
      %s14 = sshll.u32 [#allocation2], 4
      %s15 = int_to_ptr.vmem [resolvable:$true] %s14
      %17 = dma.hbm_to_vmem [thread:$0]  %s0, 128, %s15, [#allocation3]
    $region5: #{tpu_custom_call.1} parent=1 // pred_fallthru
      _
    // Predicated region
    $region6: #{tpu_custom_call.1} parent=1 // pred_check
      _
    $region7: #{tpu_custom_call.1} parent=1 // pred_check_branch
      %19 = sbr.rel (0) target = $region9
    $region8: #{tpu_custom_call.1} parent=1 // pred_region
      %20 = dma.done [#allocation3], 128
    $region9: #{tpu_custom_call.1} parent=1 // pred_fallthru
      _
    %v21 = vld [vmem:[#allocation2] sm:$0x1f]
    %v22 = vmax.f32 %v21, 0.0
    %24 = vrot.lane.b32.xlu0 %v22, 120
    %v25 = vpop.permute.xlu0 %24
    %v27 = vadd.f32 %v22, %v25
    %28 = vrot.lane.b32.xlu0 %v22, 112
    %v29 = vpop.permute.xlu0 %28
    %v31 = vadd.f32 %v27, %v29
    %32 = vrot.lane.b32.xlu0 %v22, 104
    %v33 = vpop.permute.xlu0 %32
    %v35 = vadd.f32 %v31, %v33
    %36 = vrot.lane.b32.xlu0 %v22, 96
    %v37 = vpop.permute.xlu0 %36
    %v39 = vadd.f32 %v35, %v37
    %40 = vrot.lane.b32.xlu0 %v22, 88
    %v41 = vpop.permute.xlu0 %40
    %v43 = vadd.f32 %v39, %v41
    %44 = vrot.lane.b32.xlu0 %v22, 80
    %v45 = vpop.permute.xlu0 %44
    %v47 = vadd.f32 %v43, %v45
    %48 = vrot.lane.b32.xlu0 %v22, 72
    %v49 = vpop.permute.xlu0 %48
    %v51 = vadd.f32 %v47, %v49
    %v52 = vmax.f32 %v51, 1e-12
    %v53 = vrcp.pop %v52
    %v54 = vmul.f32 1.0, %v53
    %v55 = vmul.f32 %v22, %v54
    %vm56 = vcmask 61440
    %57 = vst.msk [vmem:[#allocation5] sm:$0x1f] %vm56, %v55
    %v58 = vld [vmem:[#allocation2] sm:$0x1f]
    %v59 = vmax.f32 %v58, 0.0
    %61 = vrot.lane.b32.xlu0 %v54, 8
    %v62 = vpop.permute.xlu0 %61
    %v64 = vmul.f32 %v59, %v62
    %vm65 = vcmask 127040
    %66 = vst.msk [vmem:[#allocation5] sm:$0x1f] %vm65, %v64
    %v67 = vld [vmem:[#allocation2] sm:$0x1f]
    %v68 = vmax.f32 %v67, 0.0
    %69 = vrot.lane.b32.xlu0 %v54, 16
    %v70 = vpop.permute.xlu0 %69
    %v72 = vmul.f32 %v68, %v70
    %vm73 = vcmask 192640
    %74 = vst.msk [vmem:[#allocation5] sm:$0x1f] %vm73, %v72
    %v75 = vld [vmem:[#allocation2] sm:$0x1f]
    %v76 = vmax.f32 %v75, 0.0
    %77 = vrot.lane.b32.xlu0 %v54, 24
    %v78 = vpop.permute.xlu0 %77
    %v80 = vmul.f32 %v76, %v78
    %vm81 = vcmask 258240
    %82 = vst.msk [vmem:[#allocation5] sm:$0x1f] %vm81, %v80
    %v83 = vld [vmem:[#allocation2] sm:$0x1f]
    %v84 = vmax.f32 %v83, 0.0
    %85 = vrot.lane.b32.xlu0 %v54, 32
    %v86 = vpop.permute.xlu0 %85
    %v88 = vmul.f32 %v84, %v86
    %vm89 = vcmask 323840
    %90 = vst.msk [vmem:[#allocation5] sm:$0x1f] %vm89, %v88
    %v91 = vld [vmem:[#allocation2] sm:$0x1f]
    %v92 = vmax.f32 %v91, 0.0
    %93 = vrot.lane.b32.xlu0 %v54, 40
    %v94 = vpop.permute.xlu0 %93
    %v96 = vmul.f32 %v92, %v94
    %vm97 = vcmask 389440
    %98 = vst.msk [vmem:[#allocation5] sm:$0x1f] %vm97, %v96
    %v99 = vld [vmem:[#allocation2] sm:$0x1f]
    %v100 = vmax.f32 %v99, 0.0
    %101 = vrot.lane.b32.xlu0 %v54, 48
    %v102 = vpop.permute.xlu0 %101
    %v104 = vmul.f32 %v100, %v102
    %vm105 = vcmask 455040
    %106 = vst.msk [vmem:[#allocation5] sm:$0x1f] %vm105, %v104
    %v107 = vld [vmem:[#allocation2] sm:$0x1f]
    %v108 = vmax.f32 %v107, 0.0
    %109 = vrot.lane.b32.xlu0 %v54, 56
    %v110 = vpop.permute.xlu0 %109
    %v112 = vmul.f32 %v108, %v110
    %vm113 = vcmask 520640
    %114 = vst.msk [vmem:[#allocation5] sm:$0x1f] %vm113, %v112
    // Predicated region
    $region10: #{tpu_custom_call.1} parent=1 // pred_check
      _
    $region11: #{tpu_custom_call.1} parent=1 // pred_check_branch
      %116 = sbr.rel (0) target = $region13
    $region12: #{tpu_custom_call.1} parent=1 // pred_region
      %s118 = ssub.s32 128, 128
      %119 = vsyncadd [#allocation4], %s118
      %s121 = sshll.u32 [#allocation5], 4
      %s122 = int_to_ptr.vmem [resolvable:$true] %s121
      %124 = dma.vmem_to_hbm [thread:$0]  %s122, 128, %s1, [#allocation4]
    $region13: #{tpu_custom_call.1} parent=1 // pred_fallthru
      _
    // Predicated region
    $region14: #{tpu_custom_call.1} parent=1 // pred_check
      _
    $region15: #{tpu_custom_call.1} parent=1 // pred_check_branch
      %126 = sbr.rel (0) target = $region17
    $region16: #{tpu_custom_call.1} parent=1 // pred_region
      %127 = dma.done [#allocation4], 128
    $region17: #{tpu_custom_call.1} parent=1 // pred_fallthru
      _
    %128 = vsyncpa [#allocation3], 1
    %129 = vsyncpa [#allocation4], 1

</llo_original>
